<compile_context>
chip_gen: v6e
topology: v6e:2x2x1
jax: 0.10.0
libtpu: 0.0.40
codegen_flags: <defaults>
</compile_context>

<pallas_src>
import functools

import jax
import jax.numpy as jnp
from jax.experimental import pallas as pl
from jax.experimental.pallas import tpu as pltpu


BN_EPS = 1e-5
LANE = 128
NEG_BIG = -1e30  # masks padded class lanes out of the final log_softmax


def _round_up(n, m=LANE):
    return ((n + m - 1) // m) * m


# ----------------------------------------------------------------------------
# Fused Pallas kernel (all layers in one call, everything VMEM-resident)
# ----------------------------------------------------------------------------
def _make_fused_sage_kernel(num_layers):
    """Kernel args: (a_ref, x_ref, w0, b0, ..., w_{L-1}, b_{L-1}, o_ref).

    w_i is the packed, 128-lane-aligned [f_in_pad, 2*f_out_pad] weight
    [Wl' | Wr'] (BN folded for hidden layers); b_i is the folded bias
    [1, f_out_pad] (padded lanes are 0, or -1e30 on the last layer).
    """
    def kernel(a_ref, x_ref, *refs):
        o_ref = refs[-1]
        a = a_ref[...]                      # [N, N] bf16, resident for all layers
        x = x_ref[...]                      # [N, f_in_pad] bf16
        for li in range(num_layers):
            w_ref = refs[2 * li]
            b_ref = refs[2 * li + 1]
            half = w_ref.shape[-1] // 2     # multiple of 128 -> free lane-aligned split
            # Single stacked linear: x @ [Wl' | Wr'] -> [N, 2*half]   (MXU, bf16, f32 acc)
            xw = jnp.dot(x, w_ref[...], preferred_element_type=jnp.float32)
            xwl = xw[:, :half]
            xwr = xw[:, half:]
            # Mean aggregation, reordered: A @ (x @ Wl') -> [N, half]  (MXU)
            h = (jnp.dot(a, xwl.astype(a.dtype),
                         preferred_element_type=jnp.float32)
                 + xwr + b_ref[...])
            if li < num_layers - 1:
                # eval BatchNorm folded into w/b; dropout = identity (eval mode)
                x = jnp.maximum(h, 0.0).astype(a.dtype)
            else:
                # numerically-stable log_softmax over classes (f32); padded
                # lanes carry bias = -1e30 so they contribute ~0 to the sum.
                m = jnp.max(h, axis=-1, keepdims=True)
                z = h - m
                o_ref[...] = z - jnp.log(
                    jnp.sum(jnp.exp(z), axis=-1, keepdims=True))
    return kernel


def _vmem_compiler_params():
    # Raise the scoped VMEM limit toward physical; conservative fallback fits
    # v5e/v6e (128 MiB) and v7x (64 MiB).
    try:
        cap = pltpu.get_tpu_info().vmem_capacity_bytes
        limit = int(cap * 0.85)
    except Exception:
        limit = 48 * 1024 * 1024
    return pltpu.CompilerParams(vmem_limit_bytes=limit)


# ----------------------------------------------------------------------------
# Host-side one-time prep: fold BN + bias, pad to 128 lanes, pack, cast to bf16
# ----------------------------------------------------------------------------
def prepare_inference_params(params):
    num_layers = len(params["convs"])
    prepped = []
    for li in range(num_layers):
        conv = params["convs"][li]
        wl_t, wr_t, b = conv["wl_t"], conv["wr_t"], conv["b"]   # [f_in,f_out], [f_out]
        last = li == num_layers - 1
        if not last:
            bn = params["bns"][li]
            scale = bn["gamma"] * jax.lax.rsqrt(bn["running_var"] + BN_EPS)
            wl_t = wl_t * scale
            wr_t = wr_t * scale
            b = (b - bn["running_mean"]) * scale + bn["beta"]
        f_in, f_out = wl_t.shape
        f_in_pad, f_out_pad = _round_up(f_in), _round_up(f_out)

        def pad_w(w):
            return jnp.zeros((f_in_pad, f_out_pad), jnp.float32).at[:f_in, :f_out].set(w)

        w_packed = jnp.concatenate([pad_w(wl_t), pad_w(wr_t)],
                                   axis=1).astype(jnp.bfloat16)
        pad_val = NEG_BIG if last else 0.0
        b_pad = jnp.full((f_out_pad,), pad_val, jnp.float32).at[:f_out].set(b)
        prepped.append((w_packed, b_pad.reshape(1, f_out_pad)))
    return tuple(prepped)


def prepare_inputs(x, a_norm):
    """Pre-cast A/x to bf16 and lane-pad x once on the host (outside the jit)."""
    n, f_in = x.shape
    f_in_pad = _round_up(f_in)
    x_pad = jnp.zeros((n, f_in_pad), jnp.float32).at[:, :f_in].set(x)
    return x_pad.astype(jnp.bfloat16), a_norm.astype(jnp.bfloat16)


# ----------------------------------------------------------------------------
# Forward: one fused, grid-less pallas_call
# ----------------------------------------------------------------------------
@functools.partial(jax.jit, static_argnames=("out_channels",))
def sage_forward(prepped_params, x_bf16, a_bf16, *, out_channels):
    num_layers = len(prepped_params)
    n = x_bf16.shape[0]
    f_out_pad = prepped_params[-1][0].shape[-1] // 2

    vmem_spec = pl.BlockSpec(memory_space=pltpu.MemorySpace.VMEM)

    inputs = [a_bf16, x_bf16]
    for w, b in prepped_params:
        inputs += [w, b]
    in_specs = [vmem_spec] * len(inputs)

    # TODO(synk): for graphs where the dense [N, N] adjacency no longer fits in
    # VMEM (N >~ 7k on v5e/v6e, ~5k on v7x's 64 MiB), keep the small [N, F] x
    # resident in VMEM scratch and stream A row-tiles from HBM inside one fused
    # call: grid=(num_layers, N//tm) with the row axis "parallel" (2 TCs on
    # v7x) and the layer axis "arbitrary" — not per-layer pallas_calls.
    out_pad = pl.pallas_call(
        _make_fused_sage_kernel(num_layers),
        out_shape=jax.ShapeDtypeStruct((n, f_out_pad), jnp.float32),
        in_specs=in_specs,
        out_specs=vmem_spec,
        compiler_params=_vmem_compiler_params(),
    )(*inputs)
    return out_pad[:, :out_channels]


# ----------------------------------------------------------------------------
# Deterministic parameter init + graph construction (reference-style params)
# ----------------------------------------------------------------------------
def init_sage_params(key, in_channels, hidden_channels, out_channels, num_layers):
    dims = [in_channels] + [hidden_channels] * (num_layers - 1) + [out_channels]
    params = {"convs": [], "bns": []}
    for li in range(num_layers):
        f_in, f_out = dims[li], dims[li + 1]
        key, k1, k2 = jax.random.split(key, 3)
        scale = 1.0 / jnp.sqrt(jnp.float32(f_in))
        wl = jax.random.uniform(k1, (f_out, f_in), jnp.float32, -scale, scale)
        wr = jax.random.uniform(k2, (f_out, f_in), jnp.float32, -scale, scale)
        bias = jnp.zeros((f_out,), jnp.float32)
        params["convs"].append({"wl_t": wl.T, "wr_t": wr.T, "b": bias})
        if li < num_layers - 1:
            params["bns"].append({
                "gamma": jnp.ones((f_out,), jnp.float32),
                "beta": jnp.zeros((f_out,), jnp.float32),
                "running_mean": jnp.zeros((f_out,), jnp.float32),
                "running_var": jnp.ones((f_out,), jnp.float32),
            })
    return params


def build_mean_adjacency(key, num_nodes, p=0.15):
    """Dense random graph, row-normalized for mean aggregation."""
    adj = jax.random.bernoulli(key, p, (num_nodes, num_nodes)).astype(jnp.float32)
    adj = adj * (1.0 - jnp.eye(num_nodes, dtype=jnp.float32))  # no self loops
    deg = jnp.sum(adj, axis=1, keepdims=True)
    return adj / jnp.maximum(deg, 1.0)


if __name__ == "__main__":
    key = jax.random.PRNGKey(0)
    k_x, k_adj, k_param = jax.random.split(key, 3)

    # small shapes consistent with the module
    num_nodes = 64
    in_channels, hidden_channels, out_channels = 16, 32, 8
    num_layers = 3
    dropout = 0.5  # inactive in eval mode

    x = jax.random.normal(k_x, (num_nodes, in_channels), jnp.float32)
    a_norm = build_mean_adjacency(k_adj, num_nodes)
    params = init_sage_params(k_param, in_channels, hidden_channels,
                              out_channels, num_layers)

    prepped = prepare_inference_params(params)          # one-time host prep
    x_bf16, a_bf16 = prepare_inputs(x, a_norm)          # pre-cast / pre-pad

    out = sage_forward(prepped, x_bf16, a_bf16, out_channels=out_channels)
    jax.block_until_ready(out)

    assert out.shape == (num_nodes, out_channels)
    # log_softmax rows should sum (in prob space) to ~1 over the real classes
    assert jnp.allclose(jnp.sum(jnp.exp(out), axis=-1), 1.0, atol=1e-3)
    assert bool(jnp.all(jnp.isfinite(out)))
    print("KERNEL_OK")
</pallas_src>

<mosaic_0001>
module attributes {stable_mosaic.version = 11 : i64} {
  func.func @kernel(%arg0: memref<64x64xbf16, #tpu.memory_space<vmem>>, %arg1: memref<64x128xbf16, #tpu.memory_space<vmem>>, %arg2: memref<128x256xbf16, #tpu.memory_space<vmem>>, %arg3: memref<1x128xf32, #tpu.memory_space<vmem>>, %arg4: memref<128x256xbf16, #tpu.memory_space<vmem>>, %arg5: memref<1x128xf32, #tpu.memory_space<vmem>>, %arg6: memref<128x256xbf16, #tpu.memory_space<vmem>>, %arg7: memref<1x128xf32, #tpu.memory_space<vmem>>, %arg8: memref<64x128xf32, #tpu.memory_space<vmem>>) attributes {dimension_semantics = [], scalar_prefetch = 0 : i64, scratch_operands = 0 : i64, tpu.core_type = #tpu.core_type<tc>} {
    %c0 = arith.constant 0 : index
    %c0_0 = arith.constant 0 : index
    %0 = vector.load %arg0[%c0, %c0_0] : memref<64x64xbf16, #tpu.memory_space<vmem>>, vector<64x64xbf16>
    %c0_1 = arith.constant 0 : index
    %c0_2 = arith.constant 0 : index
    %1 = vector.load %arg1[%c0_1, %c0_2] : memref<64x128xbf16, #tpu.memory_space<vmem>>, vector<64x128xbf16>
    %c0_3 = arith.constant 0 : index
    %c0_4 = arith.constant 0 : index
    %2 = vector.load %arg2[%c0_3, %c0_4] : memref<128x256xbf16, #tpu.memory_space<vmem>>, vector<128x256xbf16>
    %cst = arith.constant dense<0.000000e+00> : vector<64x256xf32>
    %3 = tpu.matmul %1, %2, %cst {dimension_numbers = #tpu.dot_dimension_numbers<[1], [0], [0], [1], [0, 0, 1, 1], [], []>} : vector<64x128xbf16>, vector<128x256xbf16>, vector<64x256xf32> -> vector<64x256xf32>
    %4 = vector.extract_strided_slice %3 {offsets = [0, 0], sizes = [64, 128], strides = [1, 1]} : vector<64x256xf32> to vector<64x128xf32>
    %5 = vector.extract_strided_slice %3 {offsets = [0, 128], sizes = [64, 128], strides = [1, 1]} : vector<64x256xf32> to vector<64x128xf32>
    %6 = arith.truncf %4 : vector<64x128xf32> to vector<64x128xbf16>
    %cst_5 = arith.constant dense<0.000000e+00> : vector<64x128xf32>
    %7 = tpu.matmul %0, %6, %cst_5 {dimension_numbers = #tpu.dot_dimension_numbers<[1], [0], [0], [1], [0, 0, 1, 1], [], []>} : vector<64x64xbf16>, vector<64x128xbf16>, vector<64x128xf32> -> vector<64x128xf32>
    %8 = arith.addf %7, %5 : vector<64x128xf32>
    %c0_6 = arith.constant 0 : index
    %c0_7 = arith.constant 0 : index
    %9 = vector.load %arg3[%c0_6, %c0_7] : memref<1x128xf32, #tpu.memory_space<vmem>>, vector<1x128xf32>
    %10 = vector.broadcast %9 : vector<1x128xf32> to vector<64x128xf32>
    %11 = arith.addf %8, %10 : vector<64x128xf32>
    %cst_8 = arith.constant 0.000000e+00 : f32
    %12 = vector.broadcast %cst_8 : f32 to vector<64x128xf32>
    %13 = arith.maximumf %11, %12 : vector<64x128xf32>
    %14 = arith.truncf %13 : vector<64x128xf32> to vector<64x128xbf16>
    %c0_9 = arith.constant 0 : index
    %c0_10 = arith.constant 0 : index
    %15 = vector.load %arg4[%c0_9, %c0_10] : memref<128x256xbf16, #tpu.memory_space<vmem>>, vector<128x256xbf16>
    %cst_11 = arith.constant dense<0.000000e+00> : vector<64x256xf32>
    %16 = tpu.matmul %14, %15, %cst_11 {dimension_numbers = #tpu.dot_dimension_numbers<[1], [0], [0], [1], [0, 0, 1, 1], [], []>} : vector<64x128xbf16>, vector<128x256xbf16>, vector<64x256xf32> -> vector<64x256xf32>
    %17 = vector.extract_strided_slice %16 {offsets = [0, 0], sizes = [64, 128], strides = [1, 1]} : vector<64x256xf32> to vector<64x128xf32>
    %18 = vector.extract_strided_slice %16 {offsets = [0, 128], sizes = [64, 128], strides = [1, 1]} : vector<64x256xf32> to vector<64x128xf32>
    %19 = arith.truncf %17 : vector<64x128xf32> to vector<64x128xbf16>
    %cst_12 = arith.constant dense<0.000000e+00> : vector<64x128xf32>
    %20 = tpu.matmul %0, %19, %cst_12 {dimension_numbers = #tpu.dot_dimension_numbers<[1], [0], [0], [1], [0, 0, 1, 1], [], []>} : vector<64x64xbf16>, vector<64x128xbf16>, vector<64x128xf32> -> vector<64x128xf32>
    %21 = arith.addf %20, %18 : vector<64x128xf32>
    %c0_13 = arith.constant 0 : index
    %c0_14 = arith.constant 0 : index
    %22 = vector.load %arg5[%c0_13, %c0_14] : memref<1x128xf32, #tpu.memory_space<vmem>>, vector<1x128xf32>
    %23 = vector.broadcast %22 : vector<1x128xf32> to vector<64x128xf32>
    %24 = arith.addf %21, %23 : vector<64x128xf32>
    %cst_15 = arith.constant 0.000000e+00 : f32
    %25 = vector.broadcast %cst_15 : f32 to vector<64x128xf32>
    %26 = arith.maximumf %24, %25 : vector<64x128xf32>
    %27 = arith.truncf %26 : vector<64x128xf32> to vector<64x128xbf16>
    %c0_16 = arith.constant 0 : index
    %c0_17 = arith.constant 0 : index
    %28 = vector.load %arg6[%c0_16, %c0_17] : memref<128x256xbf16, #tpu.memory_space<vmem>>, vector<128x256xbf16>
    %cst_18 = arith.constant dense<0.000000e+00> : vector<64x256xf32>
    %29 = tpu.matmul %27, %28, %cst_18 {dimension_numbers = #tpu.dot_dimension_numbers<[1], [0], [0], [1], [0, 0, 1, 1], [], []>} : vector<64x128xbf16>, vector<128x256xbf16>, vector<64x256xf32> -> vector<64x256xf32>
    %30 = vector.extract_strided_slice %29 {offsets = [0, 0], sizes = [64, 128], strides = [1, 1]} : vector<64x256xf32> to vector<64x128xf32>
    %31 = vector.extract_strided_slice %29 {offsets = [0, 128], sizes = [64, 128], strides = [1, 1]} : vector<64x256xf32> to vector<64x128xf32>
    %32 = arith.truncf %30 : vector<64x128xf32> to vector<64x128xbf16>
    %cst_19 = arith.constant dense<0.000000e+00> : vector<64x128xf32>
    %33 = tpu.matmul %0, %32, %cst_19 {dimension_numbers = #tpu.dot_dimension_numbers<[1], [0], [0], [1], [0, 0, 1, 1], [], []>} : vector<64x64xbf16>, vector<64x128xbf16>, vector<64x128xf32> -> vector<64x128xf32>
    %34 = arith.addf %33, %31 : vector<64x128xf32>
    %c0_20 = arith.constant 0 : index
    %c0_21 = arith.constant 0 : index
    %35 = vector.load %arg7[%c0_20, %c0_21] : memref<1x128xf32, #tpu.memory_space<vmem>>, vector<1x128xf32>
    %36 = vector.broadcast %35 : vector<1x128xf32> to vector<64x128xf32>
    %37 = arith.addf %34, %36 : vector<64x128xf32>
    %cst_22 = arith.constant dense<0xFF800000> : vector<64xf32>
    %38 = vector.multi_reduction <maximumf>, %37, %cst_22 [1] : vector<64x128xf32> to vector<64xf32>
    %39 = vector.shape_cast %38 : vector<64xf32> to vector<64x1xf32>
    %40 = vector.broadcast %39 : vector<64x1xf32> to vector<64x128xf32>
    %41 = arith.subf %37, %40 : vector<64x128xf32>
    %42 = math.exp %41 : vector<64x128xf32>
    %cst_23 = arith.constant dense<0.000000e+00> : vector<64xf32>
    %43 = vector.multi_reduction <add>, %42, %cst_23 [1] : vector<64x128xf32> to vector<64xf32>
    %44 = vector.shape_cast %43 : vector<64xf32> to vector<64x1xf32>
    %45 = math.log %44 : vector<64x1xf32>
    %46 = vector.broadcast %45 : vector<64x1xf32> to vector<64x128xf32>
    %47 = arith.subf %41, %46 : vector<64x128xf32>
    %c0_24 = arith.constant 0 : index
    %c0_25 = arith.constant 0 : index
    %48 = vector.load %arg8[%c0_24, %c0_25] : memref<64x128xf32, #tpu.memory_space<vmem>>, vector<64x128xf32>
    tpu.vector_store %arg8[%c0_24, %c0_25], %47 {strides = array<i32>} : memref<64x128xf32, #tpu.memory_space<vmem>>, vector<64x128xf32>,
    return
  }
}

</mosaic_0001>

<llo_original>
// kernel: sage_forward.1
$region0: #{sage_forward.1}
  #allocation0 [shape = 'u32[]', space=smem, size = 0x4, offset = 0x4, fixed_abs, tag = 'smem constant byte address 0x4 - core index']
  #allocation1 [shape = 'u32[144,128]{1,0:T(1,128)}', space=vmem, size = 0x12000, scoped, tag = 'internal scratch']
  %s0 = inlined_call_operand.hbm [shape: bf16[64,64], index: 0, kind: input, shape index: {}]
  %s1 = inlined_call_operand.hbm [shape: bf16[64,128], index: 1, kind: input, shape index: {}]
  %s2 = inlined_call_operand.hbm [shape: bf16[128,256], index: 2, kind: input, shape index: {}]
  %s3 = inlined_call_operand.vmem [shape: f32[1,128], index: 3, kind: input, shape index: {}]
  %s4 = inlined_call_operand.hbm [shape: bf16[128,256], index: 4, kind: input, shape index: {}]
  %s5 = inlined_call_operand.vmem [shape: f32[1,128], index: 5, kind: input, shape index: {}]
  %s6 = inlined_call_operand.hbm [shape: bf16[128,256], index: 6, kind: input, shape index: {}]
  %s7 = inlined_call_operand.vmem [shape: f32[1,128], index: 7, kind: input, shape index: {}]
  %s8 = inlined_call_operand.vmem [shape: f32[64,128], index: 8, kind: output, shape index: {}]
  %s9 = sld [smem:[#allocation0]]
  $region62: #{sage_forward.1} parent=0
    _
  %s11 = ssub.s32 1, %s9
  %s12 = scalar_select 0, %s11, %s9
  $region1: #{sage_forward.1} parent=0
    #allocation2 [shape = 'u8[16384]{0}', space=vmem, size = 0x4000, scoped, tag = 'input window, operand 0, single buffered']
    #allocation3 [shape = 's32[1]{0}', space=sflag, size = 0x4, scoped, tag = 'scoped memory for sage_forward.1']
    #allocation4 [shape = 'u8[16384]{0}', space=vmem, size = 0x4000, scoped, tag = 'input window, operand 1, single buffered']
    #allocation5 [shape = 's32[1]{0}', space=sflag, size = 0x4, scoped, tag = 'scoped memory for sage_forward.1']
    #allocation6 [shape = 'u8[65536]{0}', space=vmem, size = 0x10000, scoped, tag = 'input window, operand 2, single buffered']
    #allocation7 [shape = 'u8[65536]{0}', space=vmem, size = 0x10000, scoped, tag = 'input window, operand 4, single buffered']
    #allocation8 [shape = 's32[1]{0}', space=sflag, size = 0x4, scoped, tag = 'scoped memory for sage_forward.1']
    #allocation9 [shape = 'u8[65536]{0}', space=vmem, size = 0x10000, scoped, tag = 'input window, operand 6, single buffered']
    %13 = vsyncpa [#allocation3], 0
    %14 = vsyncpa [#allocation5], 0
    %15 = vsyncpa [#allocation8], 0
    // Predicated region
    $region2: #{sage_forward.1} parent=1 // pred_check
      _
    $region3: #{sage_forward.1} parent=1 // pred_check_branch
      %17 = sbr.rel (0) target = $region5
    $region4: #{sage_forward.1} parent=1 // pred_region
      %s19 = ssub.s32 512, 512
      %20 = vsyncadd [#allocation3], %s19
      %s21 = sshll.u32 [#allocation2], 4
      %s22 = int_to_ptr.vmem [resolvable:$true] %s21
      %27 = dma.hbm_to_vmem [thread:$0]  %s0, 512, %s22, [#allocation3], 64, 64, 4
    $region5: #{sage_forward.1} parent=1 // pred_fallthru
      _
    // Predicated region
    $region6: #{sage_forward.1} parent=1 // pred_check
      _
    $region7: #{sage_forward.1} parent=1 // pred_check_branch
      %29 = sbr.rel (0) target = $region9
    $region8: #{sage_forward.1} parent=1 // pred_region
      %s31 = ssub.s32 512, 512
      %32 = vsyncadd [#allocation5], %s31
      %s33 = sshll.u32 [#allocation4], 4
      %s34 = int_to_ptr.vmem [resolvable:$true] %s33
      %39 = dma.hbm_to_vmem [thread:$0]  %s1, 512, %s34, [#allocation5], 64, 64, 4
    $region9: #{sage_forward.1} parent=1 // pred_fallthru
      _
    // Predicated region
    $region10: #{sage_forward.1} parent=1 // pred_check
      _
    $region11: #{sage_forward.1} parent=1 // pred_check_branch
      %41 = sbr.rel (0) target = $region13
    $region12: #{sage_forward.1} parent=1 // pred_region
      %s43 = ssub.s32 2048, 2048
      %44 = vsyncadd [#allocation5], %s43
      %s45 = sshll.u32 [#allocation6], 4
      %s46 = int_to_ptr.vmem [resolvable:$true] %s45
      %51 = dma.hbm_to_vmem [thread:$0]  %s2, 2048, %s46, [#allocation5], 128, 128, 8
    $region13: #{sage_forward.1} parent=1 // pred_fallthru
      _
    // Predicated region
    $region14: #{sage_forward.1} parent=1 // pred_check
      _
    $region15: #{sage_forward.1} parent=1 // pred_check_branch
      %53 = sbr.rel (0) target = $region17
    $region16: #{sage_forward.1} parent=1 // pred_region
      _
    $region17: #{sage_forward.1} parent=1 // pred_fallthru
      _
    // Predicated region
    $region18: #{sage_forward.1} parent=1 // pred_check
      _
    $region19: #{sage_forward.1} parent=1 // pred_check_branch
      %55 = sbr.rel (0) target = $region21
    $region20: #{sage_forward.1} parent=1 // pred_region
      %s57 = ssub.s32 2048, 2048
      %58 = vsyncadd [#allocation8], %s57
      %s59 = sshll.u32 [#allocation7], 4
      %s60 = int_to_ptr.vmem [resolvable:$true] %s59
      %65 = dma.hbm_to_vmem [thread:$0]  %s4, 2048, %s60, [#allocation8], 128, 128, 8
    $region21: #{sage_forward.1} parent=1 // pred_fallthru
      _
    // Predicated region
    $region22: #{sage_forward.1} parent=1 // pred_check
      _
    $region23: #{sage_forward.1} parent=1 // pred_check_branch
      %67 = sbr.rel (0) target = $region25
    $region24: #{sage_forward.1} parent=1 // pred_region
      _
    $region25: #{sage_forward.1} parent=1 // pred_fallthru
      _
    // Predicated region
    $region26: #{sage_forward.1} parent=1 // pred_check
      _
    $region27: #{sage_forward.1} parent=1 // pred_check_branch
      %69 = sbr.rel (0) target = $region29
    $region28: #{sage_forward.1} parent=1 // pred_region
      %s71 = ssub.s32 2048, 2048
      %72 = vsyncadd [#allocation8], %s71
      %s73 = sshll.u32 [#allocation9], 4
      %s74 = int_to_ptr.vmem [resolvable:$true] %s73
      %79 = dma.hbm_to_vmem [thread:$0]  %s6, 2048, %s74, [#allocation8], 128, 128, 8
    $region29: #{sage_forward.1} parent=1 // pred_fallthru
      _
    // Predicated region
    $region30: #{sage_forward.1} parent=1 // pred_check
      _
    $region31: #{sage_forward.1} parent=1 // pred_check_branch
      %81 = sbr.rel (0) target = $region33
    $region32: #{sage_forward.1} parent=1 // pred_region
      _
    $region33: #{sage_forward.1} parent=1 // pred_fallthru
      _
    // Predicated region
    $region34: #{sage_forward.1} parent=1 // pred_check
      _
    $region35: #{sage_forward.1} parent=1 // pred_check_branch
      %83 = sbr.rel (0) target = $region37
    $region36: #{sage_forward.1} parent=1 // pred_region
      %84 = dma.done [#allocation3], 512
    $region37: #{sage_forward.1} parent=1 // pred_fallthru
      _
    // Predicated region
    $region38: #{sage_forward.1} parent=1 // pred_check
      _
    $region39: #{sage_forward.1} parent=1 // pred_check_branch
      %86 = sbr.rel (0) target = $region41
    $region40: #{sage_forward.1} parent=1 // pred_region
      %87 = dma.done [#allocation5], 512
    $region41: #{sage_forward.1} parent=1 // pred_fallthru
      _
    // Predicated region
    $region42: #{sage_forward.1} parent=1 // pred_check
      _
    $region43: #{sage_forward.1} parent=1 // pred_check_branch
      %89 = sbr.rel (0) target = $region45
    $region44: #{sage_forward.1} parent=1 // pred_region
      %90 = dma.done [#allocation5], 2048
    $region45: #{sage_forward.1} parent=1 // pred_fallthru
      _
    // Predicated region
    $region46: #{sage_forward.1} parent=1 // pred_check
      _
    $region47: #{sage_forward.1} parent=1 // pred_check_branch
      %92 = sbr.rel (0) target = $region49
    $region48: #{sage_forward.1} parent=1 // pred_region
      %93 = dma.done [#allocation8], 2048
    $region49: #{sage_forward.1} parent=1 // pred_fallthru
      _
    // Predicated region
    $region50: #{sage_forward.1} parent=1 // pred_check
      _
    $region51: #{sage_forward.1} parent=1 // pred_check_branch
      %95 = sbr.rel (0) target = $region53
    $region52: #{sage_forward.1} parent=1 // pred_region
      %96 = dma.done [#allocation8], 2048
    $region53: #{sage_forward.1} parent=1 // pred_fallthru
      _
    %v98 = vld [vmem:[#allocation2] sm:$0xf]
    %v99 = vld [vmem:[#allocation2 + $0x4] sm:$0xf]
    %v100 = vld [vmem:[#allocation2 + $0x8] sm:$0xf]
    %v101 = vld [vmem:[#allocation2 + $0xc] sm:$0xf]
    %v102 = vld [vmem:[#allocation2 + $0x10] sm:$0xf]
    %v103 = vld [vmem:[#allocation2 + $0x14] sm:$0xf]
    %v104 = vld [vmem:[#allocation2 + $0x18] sm:$0xf]
    %v105 = vld [vmem:[#allocation2 + $0x1c] sm:$0xf]
    %v106 = vld [vmem:[#allocation4] sm:$0xf]
    %v107 = vld [vmem:[#allocation4 + $0x4] sm:$0xf]
    %v108 = vld [vmem:[#allocation4 + $0x8] sm:$0xf]
    %v109 = vld [vmem:[#allocation4 + $0xc] sm:$0xf]
    %v110 = vld [vmem:[#allocation4 + $0x10] sm:$0xf]
    %v111 = vld [vmem:[#allocation4 + $0x14] sm:$0xf]
    %v112 = vld [vmem:[#allocation4 + $0x18] sm:$0xf]
    %v113 = vld [vmem:[#allocation4 + $0x1c] sm:$0xf]
    %v114 = vld [vmem:[#allocation6] sm:$0xff]
    %v115 = vld [vmem:[#allocation6 + $0x8] sm:$0xff]
    %v116 = vld [vmem:[#allocation6 + $0x10] sm:$0xff]
    %v117 = vld [vmem:[#allocation6 + $0x18] sm:$0xff]
    %v118 = vld [vmem:[#allocation6 + $0x20] sm:$0xff]
    %v119 = vld [vmem:[#allocation6 + $0x28] sm:$0xff]
    %v120 = vld [vmem:[#allocation6 + $0x30] sm:$0xff]
    %v121 = vld [vmem:[#allocation6 + $0x38] sm:$0xff]
    %v122 = vld [vmem:[#allocation6 + $0x40] sm:$0xff]
    %v123 = vld [vmem:[#allocation6 + $0x48] sm:$0xff]
    %v124 = vld [vmem:[#allocation6 + $0x50] sm:$0xff]
    %v125 = vld [vmem:[#allocation6 + $0x58] sm:$0xff]
    %v126 = vld [vmem:[#allocation6 + $0x60] sm:$0xff]
    %v127 = vld [vmem:[#allocation6 + $0x68] sm:$0xff]
    %v128 = vld [vmem:[#allocation6 + $0x70] sm:$0xff]
    %v129 = vld [vmem:[#allocation6 + $0x78] sm:$0xff]
    %v138 = vunpack.c.l.b16 %v106
    %v139 = vunpack.c.l.b16 %v107
    %v140 = vunpack.c.l.b16 %v108
    %v141 = vunpack.c.l.b16 %v109
    %v142 = vunpack.c.l.b16 %v110
    %v143 = vunpack.c.l.b16 %v111
    %v144 = vunpack.c.l.b16 %v112
    %v145 = vunpack.c.l.b16 %v113
    %v146 = vpack.c.b16 %v139, %v138
    %v147 = vpack.c.b16 %v141, %v140
    %v148 = vpack.c.b16 %v143, %v142
    %v149 = vpack.c.b16 %v145, %v144
    %v170 = vunpack.c.l.b16 %v114
    %v171 = vunpack.c.h.b16 %v114
    %v172 = vunpack.c.l.b16 %v115
    %v173 = vunpack.c.h.b16 %v115
    %v174 = vunpack.c.l.b16 %v116
    %v175 = vunpack.c.h.b16 %v116
    %v176 = vunpack.c.l.b16 %v117
    %v177 = vunpack.c.h.b16 %v117
    %v178 = vunpack.c.l.b16 %v118
    %v179 = vunpack.c.h.b16 %v118
    %v180 = vunpack.c.l.b16 %v119
    %v181 = vunpack.c.h.b16 %v119
    %v182 = vunpack.c.l.b16 %v120
    %v183 = vunpack.c.h.b16 %v120
    %v184 = vunpack.c.l.b16 %v121
    %v185 = vunpack.c.h.b16 %v121
    %v186 = vunpack.c.l.b16 %v122
    %v187 = vunpack.c.h.b16 %v122
    %v188 = vunpack.c.l.b16 %v123
    %v189 = vunpack.c.h.b16 %v123
    %v190 = vunpack.c.l.b16 %v124
    %v191 = vunpack.c.h.b16 %v124
    %v192 = vunpack.c.l.b16 %v125
    %v193 = vunpack.c.h.b16 %v125
    %v194 = vunpack.c.l.b16 %v126
    %v195 = vunpack.c.h.b16 %v126
    %v196 = vunpack.c.l.b16 %v127
    %v197 = vunpack.c.h.b16 %v127
    %v198 = vunpack.c.l.b16 %v128
    %v199 = vunpack.c.h.b16 %v128
    %v200 = vunpack.c.l.b16 %v129
    %v201 = vunpack.c.h.b16 %v129
    %v202 = vpack.c.b16 %v172, %v170
    %v203 = vpack.c.b16 %v173, %v171
    %v204 = vpack.c.b16 %v176, %v174
    %v205 = vpack.c.b16 %v177, %v175
    %v206 = vpack.c.b16 %v180, %v178
    %v207 = vpack.c.b16 %v181, %v179
    %v208 = vpack.c.b16 %v184, %v182
    %v209 = vpack.c.b16 %v185, %v183
    %v210 = vpack.c.b16 %v188, %v186
    %v211 = vpack.c.b16 %v189, %v187
    %v212 = vpack.c.b16 %v192, %v190
    %v213 = vpack.c.b16 %v193, %v191
    %v214 = vpack.c.b16 %v196, %v194
    %v215 = vpack.c.b16 %v197, %v195
    %v216 = vpack.c.b16 %v200, %v198
    %v217 = vpack.c.b16 %v201, %v199
    %234 = vmatprep.subr.bf16.mxu0 %v217
    %235 = vmatpush1.bf16.msra.mxu0 %v216
    %236 = vmatprep.subr.bf16.mxu0 %v215
    %237 = vmatpush1.bf16.msra.mxu0 %v214
    %238 = vmatprep.subr.bf16.mxu0 %v213
    %239 = vmatpush1.bf16.msra.mxu0 %v212
    %240 = vmatprep.subr.bf16.mxu0 %v211
    %241 = vmatpush1.bf16.msra.mxu0 %v210
    %242 = vmatprep.subr.bf16.mxu0 %v209
    %243 = vmatpush1.bf16.msra.mxu0 %v208
    %244 = vmatprep.subr.bf16.mxu0 %v207
    %245 = vmatpush1.bf16.msra.mxu0 %v206
    %246 = vmatprep.subr.bf16.mxu0 %v205
    %247 = vmatpush1.bf16.msra.mxu0 %v204
    %248 = vmatprep.subr.bf16.mxu0 %v203
    %249 = vmatpush1.bf16.msra.mxu0 %v202
    %250 = vmatprep.subr.bf16.mxu0 0
    %251 = vmatpush2.bf16.msra.mxu0 0
    %252 = vmatprep.subr.bf16.mxu0 0
    %253 = vmatpush2.bf16.msra.mxu0 0
    %254 = vmatprep.subr.bf16.mxu0 0
    %255 = vmatpush2.bf16.msra.mxu0 0
    %256 = vmatprep.subr.bf16.mxu0 0
    %257 = vmatpush2.bf16.msra.mxu0 0
    %258 = vmatprep.subr.bf16.mxu0 0
    %259 = vmatpush2.bf16.msra.mxu0 0
    %260 = vmatprep.subr.bf16.mxu0 0
    %261 = vmatpush2.bf16.msra.mxu0 0
    %262 = vmatprep.subr.bf16.mxu0 0
    %263 = vmatpush2.bf16.msra.mxu0 0
    %264 = vmatprep.subr.bf16.mxu0 0
    %265 = vmatpush2.bf16.msra.mxu0 0
    %266 = vmatprep.mubr.bf16.mxu0 0
    %267 = vmatmul.mubr.bf16.gmra.mxu0 %v146
    %v268 = vpop.f32.mrf.mxu0
    %v269 = vadd.f32 0.0, %v268
    %v270 = vpop.f32.mrf.mxu0
    %v271 = vadd.f32 0.0, %v270
    %v272 = vpop.f32.mrf.mxu0
    %v273 = vadd.f32 0.0, %v272
    %v274 = vpop.f32.mrf.mxu0
    %v275 = vadd.f32 0.0, %v274
    %276 = vmatprep.mubr.bf16.mxu0 0
    %277 = vmatmul.mubr.bf16.gmra.mxu0 %v147
    %v278 = vpop.f32.mrf.mxu0
    %v279 = vadd.f32 0.0, %v278
    %v280 = vpop.f32.mrf.mxu0
    %v281 = vadd.f32 0.0, %v280
    %v282 = vpop.f32.mrf.mxu0
    %v283 = vadd.f32 0.0, %v282
    %v284 = vpop.f32.mrf.mxu0
    %v285 = vadd.f32 0.0, %v284
    %286 = vmatprep.mubr.bf16.mxu0 0
    %287 = vmatmul.mubr.bf16.gmra.mxu0 %v148
    %v288 = vpop.f32.mrf.mxu0
    %v289 = vadd.f32 0.0, %v288
    %v290 = vpop.f32.mrf.mxu0
    %v291 = vadd.f32 0.0, %v290
    %v292 = vpop.f32.mrf.mxu0
    %v293 = vadd.f32 0.0, %v292
    %v294 = vpop.f32.mrf.mxu0
    %v295 = vadd.f32 0.0, %v294
    %296 = vmatprep.mubr.bf16.mxu0 0
    %297 = vmatmul.mubr.bf16.gmra.mxu0 %v149
    %v298 = vpop.f32.mrf.mxu0
    %v299 = vadd.f32 0.0, %v298
    %v300 = vpop.f32.mrf.mxu0
    %v301 = vadd.f32 0.0, %v300
    %v302 = vpop.f32.mrf.mxu0
    %v303 = vadd.f32 0.0, %v302
    %v304 = vpop.f32.mrf.mxu0
    %v305 = vadd.f32 0.0, %v304
    %306 = vdwg.mxu0
    %v307 = vpack.c.bf16 %v273, %v269
    %v308 = vpack.c.bf16 %v283, %v279
    %v309 = vpack.c.bf16 %v293, %v289
    %v310 = vpack.c.bf16 %v303, %v299
    %v319 = vunpack.c.l.b16 %v98
    %v320 = vunpack.c.l.b16 %v99
    %v321 = vunpack.c.l.b16 %v100
    %v322 = vunpack.c.l.b16 %v101
    %v323 = vunpack.c.l.b16 %v102
    %v324 = vunpack.c.l.b16 %v103
    %v325 = vunpack.c.l.b16 %v104
    %v326 = vunpack.c.l.b16 %v105
    %v327 = vpack.c.b16 %v320, %v319
    %v328 = vpack.c.b16 %v322, %v321
    %v329 = vpack.c.b16 %v324, %v323
    %v330 = vpack.c.b16 %v326, %v325
    %vm331 = vcmask 523264
    %v333 = vsel %vm331, %v327, 0
    %v336 = vsel %vm331, %v328, 0
    %v339 = vsel %vm331, %v329, 0
    %v342 = vsel %vm331, %v330, 0
    %344 = vmatprep.subr.bf16.mxu0 0
    %345 = vmatpush1.bf16.msra.mxu0 0
    %346 = vmatprep.subr.bf16.mxu0 0
    %347 = vmatpush1.bf16.msra.mxu0 0
    %348 = vmatprep.subr.bf16.mxu0 0
    %349 = vmatpush1.bf16.msra.mxu0 0
    %350 = vmatprep.subr.bf16.mxu0 0
    %351 = vmatpush1.bf16.msra.mxu0 0
    %352 = vmatprep.subr.bf16.mxu0 0
    %353 = vmatpush1.bf16.msra.mxu0 %v310
    %354 = vmatprep.subr.bf16.mxu0 0
    %355 = vmatpush1.bf16.msra.mxu0 %v309
    %356 = vmatprep.subr.bf16.mxu0 0
    %357 = vmatpush1.bf16.msra.mxu0 %v308
    %358 = vmatprep.subr.bf16.mxu0 0
    %359 = vmatpush1.bf16.msra.mxu0 %v307
    %360 = vmatprep.subr.bf16.mxu0 0
    %361 = vmatpush2.bf16.msra.mxu0 0
    %362 = vmatprep.subr.bf16.mxu0 0
    %363 = vmatpush2.bf16.msra.mxu0 0
    %364 = vmatprep.subr.bf16.mxu0 0
    %365 = vmatpush2.bf16.msra.mxu0 0
    %366 = vmatprep.subr.bf16.mxu0 0
    %367 = vmatpush2.bf16.msra.mxu0 0
    %368 = vmatprep.subr.bf16.mxu0 0
    %369 = vmatpush2.bf16.msra.mxu0 0
    %370 = vmatprep.subr.bf16.mxu0 0
    %371 = vmatpush2.bf16.msra.mxu0 0
    %372 = vmatprep.subr.bf16.mxu0 0
    %373 = vmatpush2.bf16.msra.mxu0 0
    %374 = vmatprep.subr.bf16.mxu0 0
    %375 = vmatpush2.bf16.msra.mxu0 0
    %376 = vmatprep.mubr.bf16.mxu0 0
    %377 = vmatmul.mubr.bf16.gmra.mxu0 %v333
    %v378 = vpop.f32.mrf.mxu0
    %v379 = vadd.f32 %v271, %v378
    %v380 = vpop.f32.mrf.mxu0
    %v381 = vpop.f32.mrf.mxu0
    %v382 = vadd.f32 %v275, %v381
    %v383 = vpop.f32.mrf.mxu0
    %384 = vmatprep.mubr.bf16.mxu0 0
    %385 = vmatmul.mubr.bf16.gmra.mxu0 %v336
    %v386 = vpop.f32.mrf.mxu0
    %v387 = vadd.f32 %v281, %v386
    %v388 = vpop.f32.mrf.mxu0
    %v389 = vpop.f32.mrf.mxu0
    %v390 = vadd.f32 %v285, %v389
    %v391 = vpop.f32.mrf.mxu0
    %392 = vmatprep.mubr.bf16.mxu0 0
    %393 = vmatmul.mubr.bf16.gmra.mxu0 %v339
    %v394 = vpop.f32.mrf.mxu0
    %v395 = vadd.f32 %v291, %v394
    %v396 = vpop.f32.mrf.mxu0
    %v397 = vpop.f32.mrf.mxu0
    %v398 = vadd.f32 %v295, %v397
    %v399 = vpop.f32.mrf.mxu0
    %400 = vmatprep.mubr.bf16.mxu0 0
    %401 = vmatmul.mubr.bf16.gmra.mxu0 %v342
    %v402 = vpop.f32.mrf.mxu0
    %v403 = vadd.f32 %v301, %v402
    %v404 = vpop.f32.mrf.mxu0
    %v405 = vpop.f32.mrf.mxu0
    %v406 = vadd.f32 %v305, %v405
    %v407 = vpop.f32.mrf.mxu0
    %408 = vdwg.mxu0
    %v409 = vld [vmem:[%s3] sm:$0x1]
    %v411 = vlaneseq
    %v412 = vshrl.u32 %v411, 7
    %v413 = vsub.s32 0, %v412
    %v414 = vrot.slane %v409, %v413
    %v416 = vadd.f32 %v379, %v414
    %v417 = vadd.f32 %v382, %v414
    %v418 = vadd.f32 %v387, %v414
    %v419 = vadd.f32 %v390, %v414
    %v420 = vadd.f32 %v395, %v414
    %v421 = vadd.f32 %v398, %v414
    %v422 = vadd.f32 %v403, %v414
    %v423 = vadd.f32 %v406, %v414
    %v424 = vmax.f32 %v416, 0.0
    %v425 = vmax.f32 %v417, 0.0
    %v426 = vmax.f32 %v418, 0.0
    %v427 = vmax.f32 %v419, 0.0
    %v428 = vmax.f32 %v420, 0.0
    %v429 = vmax.f32 %v421, 0.0
    %v430 = vmax.f32 %v422, 0.0
    %v431 = vmax.f32 %v423, 0.0
    %v432 = vpack.c.bf16 %v425, %v424
    %v433 = vpack.c.bf16 %v427, %v426
    %v434 = vpack.c.bf16 %v429, %v428
    %v435 = vpack.c.bf16 %v431, %v430
    %v436 = vld [vmem:[#allocation7] sm:$0xff]
    %v437 = vld [vmem:[#allocation7 + $0x8] sm:$0xff]
    %v438 = vld [vmem:[#allocation7 + $0x10] sm:$0xff]
    %v439 = vld [vmem:[#allocation7 + $0x18] sm:$0xff]
    %v440 = vld [vmem:[#allocation7 + $0x20] sm:$0xff]
    %v441 = vld [vmem:[#allocation7 + $0x28] sm:$0xff]
    %v442 = vld [vmem:[#allocation7 + $0x30] sm:$0xff]
    %v443 = vld [vmem:[#allocation7 + $0x38] sm:$0xff]
    %v444 = vld [vmem:[#allocation7 + $0x40] sm:$0xff]
    %v445 = vld [vmem:[#allocation7 + $0x48] sm:$0xff]
    %v446 = vld [vmem:[#allocation7 + $0x50] sm:$0xff]
    %v447 = vld [vmem:[#allocation7 + $0x58] sm:$0xff]
    %v448 = vld [vmem:[#allocation7 + $0x60] sm:$0xff]
    %v449 = vld [vmem:[#allocation7 + $0x68] sm:$0xff]
    %v450 = vld [vmem:[#allocation7 + $0x70] sm:$0xff]
    %v451 = vld [vmem:[#allocation7 + $0x78] sm:$0xff]
    %v468 = vunpack.c.l.b16 %v436
    %v469 = vunpack.c.h.b16 %v436
    %v470 = vunpack.c.l.b16 %v437
    %v471 = vunpack.c.h.b16 %v437
    %v472 = vunpack.c.l.b16 %v438
    %v473 = vunpack.c.h.b16 %v438
    %v474 = vunpack.c.l.b16 %v439
    %v475 = vunpack.c.h.b16 %v439
    %v476 = vunpack.c.l.b16 %v440
    %v477 = vunpack.c.h.b16 %v440
    %v478 = vunpack.c.l.b16 %v441
    %v479 = vunpack.c.h.b16 %v441
    %v480 = vunpack.c.l.b16 %v442
    %v481 = vunpack.c.h.b16 %v442
    %v482 = vunpack.c.l.b16 %v443
    %v483 = vunpack.c.h.b16 %v443
    %v484 = vunpack.c.l.b16 %v444
    %v485 = vunpack.c.h.b16 %v444
    %v486 = vunpack.c.l.b16 %v445
    %v487 = vunpack.c.h.b16 %v445
    %v488 = vunpack.c.l.b16 %v446
    %v489 = vunpack.c.h.b16 %v446
    %v490 = vunpack.c.l.b16 %v447
    %v491 = vunpack.c.h.b16 %v447
    %v492 = vunpack.c.l.b16 %v448
    %v493 = vunpack.c.h.b16 %v448
    %v494 = vunpack.c.l.b16 %v449
    %v495 = vunpack.c.h.b16 %v449
    %v496 = vunpack.c.l.b16 %v450
    %v497 = vunpack.c.h.b16 %v450
    %v498 = vunpack.c.l.b16 %v451
    %v499 = vunpack.c.h.b16 %v451
    %v500 = vpack.c.b16 %v470, %v468
    %v501 = vpack.c.b16 %v471, %v469
    %v502 = vpack.c.b16 %v474, %v472
    %v503 = vpack.c.b16 %v475, %v473
    %v504 = vpack.c.b16 %v478, %v476
    %v505 = vpack.c.b16 %v479, %v477
    %v506 = vpack.c.b16 %v482, %v480
    %v507 = vpack.c.b16 %v483, %v481
    %v508 = vpack.c.b16 %v486, %v484
    %v509 = vpack.c.b16 %v487, %v485
    %v510 = vpack.c.b16 %v490, %v488
    %v511 = vpack.c.b16 %v491, %v489
    %v512 = vpack.c.b16 %v494, %v492
    %v513 = vpack.c.b16 %v495, %v493
    %v514 = vpack.c.b16 %v498, %v496
    %v515 = vpack.c.b16 %v499, %v497
    %532 = vmatprep.subr.bf16.mxu0 %v515
    %533 = vmatpush1.bf16.msra.mxu0 %v514
    %534 = vmatprep.subr.bf16.mxu0 %v513
    %535 = vmatpush1.bf16.msra.mxu0 %v512
    %536 = vmatprep.subr.bf16.mxu0 %v511
    %537 = vmatpush1.bf16.msra.mxu0 %v510
    %538 = vmatprep.subr.bf16.mxu0 %v509
    %539 = vmatpush1.bf16.msra.mxu0 %v508
    %540 = vmatprep.subr.bf16.mxu0 %v507
    %541 = vmatpush1.bf16.msra.mxu0 %v506
    %542 = vmatprep.subr.bf16.mxu0 %v505
    %543 = vmatpush1.bf16.msra.mxu0 %v504
    %544 = vmatprep.subr.bf16.mxu0 %v503
    %545 = vmatpush1.bf16.msra.mxu0 %v502
    %546 = vmatprep.subr.bf16.mxu0 %v501
    %547 = vmatpush1.bf16.msra.mxu0 %v500
    %548 = vmatprep.subr.bf16.mxu0 0
    %549 = vmatpush2.bf16.msra.mxu0 0
    %550 = vmatprep.subr.bf16.mxu0 0
    %551 = vmatpush2.bf16.msra.mxu0 0
    %552 = vmatprep.subr.bf16.mxu0 0
    %553 = vmatpush2.bf16.msra.mxu0 0
    %554 = vmatprep.subr.bf16.mxu0 0
    %555 = vmatpush2.bf16.msra.mxu0 0
    %556 = vmatprep.subr.bf16.mxu0 0
    %557 = vmatpush2.bf16.msra.mxu0 0
    %558 = vmatprep.subr.bf16.mxu0 0
    %559 = vmatpush2.bf16.msra.mxu0 0
    %560 = vmatprep.subr.bf16.mxu0 0
    %561 = vmatpush2.bf16.msra.mxu0 0
    %562 = vmatprep.subr.bf16.mxu0 0
    %563 = vmatpush2.bf16.msra.mxu0 0
    %564 = vmatprep.mubr.bf16.mxu0 0
    %565 = vmatmul.mubr.bf16.gmra.mxu0 %v432
    %v566 = vpop.f32.mrf.mxu0
    %v567 = vadd.f32 0.0, %v566
    %v568 = vpop.f32.mrf.mxu0
    %v569 = vadd.f32 0.0, %v568
    %v570 = vpop.f32.mrf.mxu0
    %v571 = vadd.f32 0.0, %v570
    %v572 = vpop.f32.mrf.mxu0
    %v573 = vadd.f32 0.0, %v572
    %574 = vmatprep.mubr.bf16.mxu0 0
    %575 = vmatmul.mubr.bf16.gmra.mxu0 %v433
    %v576 = vpop.f32.mrf.mxu0
    %v577 = vadd.f32 0.0, %v576
    %v578 = vpop.f32.mrf.mxu0
    %v579 = vadd.f32 0.0, %v578
    %v580 = vpop.f32.mrf.mxu0
    %v581 = vadd.f32 0.0, %v580
    %v582 = vpop.f32.mrf.mxu0
    %v583 = vadd.f32 0.0, %v582
    %584 = vmatprep.mubr.bf16.mxu0 0
    %585 = vmatmul.mubr.bf16.gmra.mxu0 %v434
    %v586 = vpop.f32.mrf.mxu0
    %v587 = vadd.f32 0.0, %v586
    %v588 = vpop.f32.mrf.mxu0
    %v589 = vadd.f32 0.0, %v588
    %v590 = vpop.f32.mrf.mxu0
    %v591 = vadd.f32 0.0, %v590
    %v592 = vpop.f32.mrf.mxu0
    %v593 = vadd.f32 0.0, %v592
    %594 = vmatprep.mubr.bf16.mxu0 0
    %595 = vmatmul.mubr.bf16.gmra.mxu0 %v435
    %v596 = vpop.f32.mrf.mxu0
    %v597 = vadd.f32 0.0, %v596
    %v598 = vpop.f32.mrf.mxu0
    %v599 = vadd.f32 0.0, %v598
    %v600 = vpop.f32.mrf.mxu0
    %v601 = vadd.f32 0.0, %v600
    %v602 = vpop.f32.mrf.mxu0
    %v603 = vadd.f32 0.0, %v602
    %604 = vdwg.mxu0
    %v605 = vpack.c.bf16 %v571, %v567
    %v606 = vpack.c.bf16 %v581, %v577
    %v607 = vpack.c.bf16 %v591, %v587
    %v608 = vpack.c.bf16 %v601, %v597
    %609 = vmatprep.subr.bf16.mxu0 0
    %610 = vmatpush1.bf16.msra.mxu0 0
    %611 = vmatprep.subr.bf16.mxu0 0
    %612 = vmatpush1.bf16.msra.mxu0 0
    %613 = vmatprep.subr.bf16.mxu0 0
    %614 = vmatpush1.bf16.msra.mxu0 0
    %615 = vmatprep.subr.bf16.mxu0 0
    %616 = vmatpush1.bf16.msra.mxu0 0
    %617 = vmatprep.subr.bf16.mxu0 0
    %618 = vmatpush1.bf16.msra.mxu0 %v608
    %619 = vmatprep.subr.bf16.mxu0 0
    %620 = vmatpush1.bf16.msra.mxu0 %v607
    %621 = vmatprep.subr.bf16.mxu0 0
    %622 = vmatpush1.bf16.msra.mxu0 %v606
    %623 = vmatprep.subr.bf16.mxu0 0
    %624 = vmatpush1.bf16.msra.mxu0 %v605
    %625 = vmatprep.subr.bf16.mxu0 0
    %626 = vmatpush2.bf16.msra.mxu0 0
    %627 = vmatprep.subr.bf16.mxu0 0
    %628 = vmatpush2.bf16.msra.mxu0 0
    %629 = vmatprep.subr.bf16.mxu0 0
    %630 = vmatpush2.bf16.msra.mxu0 0
    %631 = vmatprep.subr.bf16.mxu0 0
    %632 = vmatpush2.bf16.msra.mxu0 0
    %633 = vmatprep.subr.bf16.mxu0 0
    %634 = vmatpush2.bf16.msra.mxu0 0
    %635 = vmatprep.subr.bf16.mxu0 0
    %636 = vmatpush2.bf16.msra.mxu0 0
    %637 = vmatprep.subr.bf16.mxu0 0
    %638 = vmatpush2.bf16.msra.mxu0 0
    %639 = vmatprep.subr.bf16.mxu0 0
    %640 = vmatpush2.bf16.msra.mxu0 0
    %641 = vmatprep.mubr.bf16.mxu0 0
    %642 = vmatmul.mubr.bf16.gmra.mxu0 %v333
    %v643 = vpop.f32.mrf.mxu0
    %v644 = vadd.f32 %v569, %v643
    %v645 = vpop.f32.mrf.mxu0
    %v646 = vpop.f32.mrf.mxu0
    %v647 = vadd.f32 %v573, %v646
    %v648 = vpop.f32.mrf.mxu0
    %649 = vmatprep.mubr.bf16.mxu0 0
    %650 = vmatmul.mubr.bf16.gmra.mxu0 %v336
    %v651 = vpop.f32.mrf.mxu0
    %v652 = vadd.f32 %v579, %v651
    %v653 = vpop.f32.mrf.mxu0
    %v654 = vpop.f32.mrf.mxu0
    %v655 = vadd.f32 %v583, %v654
    %v656 = vpop.f32.mrf.mxu0
    %657 = vmatprep.mubr.bf16.mxu0 0
    %658 = vmatmul.mubr.bf16.gmra.mxu0 %v339
    %v659 = vpop.f32.mrf.mxu0
    %v660 = vadd.f32 %v589, %v659
    %v661 = vpop.f32.mrf.mxu0
    %v662 = vpop.f32.mrf.mxu0
    %v663 = vadd.f32 %v593, %v662
    %v664 = vpop.f32.mrf.mxu0
    %665 = vmatprep.mubr.bf16.mxu0 0
    %666 = vmatmul.mubr.bf16.gmra.mxu0 %v342
    %v667 = vpop.f32.mrf.mxu0
    %v668 = vadd.f32 %v599, %v667
    %v669 = vpop.f32.mrf.mxu0
    %v670 = vpop.f32.mrf.mxu0
    %v671 = vadd.f32 %v603, %v670
    %v672 = vpop.f32.mrf.mxu0
    %673 = vdwg.mxu0
    %v674 = vld [vmem:[%s5] sm:$0x1]
    %v676 = vlaneseq
    %v677 = vshrl.u32 %v676, 7
    %v678 = vsub.s32 0, %v677
    %v679 = vrot.slane %v674, %v678
    %v681 = vadd.f32 %v644, %v679
    %v682 = vadd.f32 %v647, %v679
    %v683 = vadd.f32 %v652, %v679
    %v684 = vadd.f32 %v655, %v679
    %v685 = vadd.f32 %v660, %v679
    %v686 = vadd.f32 %v663, %v679
    %v687 = vadd.f32 %v668, %v679
    %v688 = vadd.f32 %v671, %v679
    %v689 = vmax.f32 %v681, 0.0
    %v690 = vmax.f32 %v682, 0.0
    %v691 = vmax.f32 %v683, 0.0
    %v692 = vmax.f32 %v684, 0.0
    %v693 = vmax.f32 %v685, 0.0
    %v694 = vmax.f32 %v686, 0.0
    %v695 = vmax.f32 %v687, 0.0
    %v696 = vmax.f32 %v688, 0.0
    %v697 = vpack.c.bf16 %v690, %v689
    %v698 = vpack.c.bf16 %v692, %v691
    %v699 = vpack.c.bf16 %v694, %v693
    %v700 = vpack.c.bf16 %v696, %v695
    %v701 = vld [vmem:[#allocation9] sm:$0xff]
    %v702 = vld [vmem:[#allocation9 + $0x8] sm:$0xff]
    %v703 = vld [vmem:[#allocation9 + $0x10] sm:$0xff]
    %v704 = vld [vmem:[#allocation9 + $0x18] sm:$0xff]
    %v705 = vld [vmem:[#allocation9 + $0x20] sm:$0xff]
    %v706 = vld [vmem:[#allocation9 + $0x28] sm:$0xff]
    %v707 = vld [vmem:[#allocation9 + $0x30] sm:$0xff]
    %v708 = vld [vmem:[#allocation9 + $0x38] sm:$0xff]
    %v709 = vld [vmem:[#allocation9 + $0x40] sm:$0xff]
    %v710 = vld [vmem:[#allocation9 + $0x48] sm:$0xff]
    %v711 = vld [vmem:[#allocation9 + $0x50] sm:$0xff]
    %v712 = vld [vmem:[#allocation9 + $0x58] sm:$0xff]
    %v713 = vld [vmem:[#allocation9 + $0x60] sm:$0xff]
    %v714 = vld [vmem:[#allocation9 + $0x68] sm:$0xff]
    %v715 = vld [vmem:[#allocation9 + $0x70] sm:$0xff]
    %v716 = vld [vmem:[#allocation9 + $0x78] sm:$0xff]
    %v733 = vunpack.c.l.b16 %v701
    %v734 = vunpack.c.h.b16 %v701
    %v735 = vunpack.c.l.b16 %v702
    %v736 = vunpack.c.h.b16 %v702
    %v737 = vunpack.c.l.b16 %v703
    %v738 = vunpack.c.h.b16 %v703
    %v739 = vunpack.c.l.b16 %v704
    %v740 = vunpack.c.h.b16 %v704
    %v741 = vunpack.c.l.b16 %v705
    %v742 = vunpack.c.h.b16 %v705
    %v743 = vunpack.c.l.b16 %v706
    %v744 = vunpack.c.h.b16 %v706
    %v745 = vunpack.c.l.b16 %v707
    %v746 = vunpack.c.h.b16 %v707
    %v747 = vunpack.c.l.b16 %v708
    %v748 = vunpack.c.h.b16 %v708
    %v749 = vunpack.c.l.b16 %v709
    %v750 = vunpack.c.h.b16 %v709
    %v751 = vunpack.c.l.b16 %v710
    %v752 = vunpack.c.h.b16 %v710
    %v753 = vunpack.c.l.b16 %v711
    %v754 = vunpack.c.h.b16 %v711
    %v755 = vunpack.c.l.b16 %v712
    %v756 = vunpack.c.h.b16 %v712
    %v757 = vunpack.c.l.b16 %v713
    %v758 = vunpack.c.h.b16 %v713
    %v759 = vunpack.c.l.b16 %v714
    %v760 = vunpack.c.h.b16 %v714
    %v761 = vunpack.c.l.b16 %v715
    %v762 = vunpack.c.h.b16 %v715
    %v763 = vunpack.c.l.b16 %v716
    %v764 = vunpack.c.h.b16 %v716
    %v765 = vpack.c.b16 %v735, %v733
    %v766 = vpack.c.b16 %v736, %v734
    %v767 = vpack.c.b16 %v739, %v737
    %v768 = vpack.c.b16 %v740, %v738
    %v769 = vpack.c.b16 %v743, %v741
    %v770 = vpack.c.b16 %v744, %v742
    %v771 = vpack.c.b16 %v747, %v745
    %v772 = vpack.c.b16 %v748, %v746
    %v773 = vpack.c.b16 %v751, %v749
    %v774 = vpack.c.b16 %v752, %v750
    %v775 = vpack.c.b16 %v755, %v753
    %v776 = vpack.c.b16 %v756, %v754
    %v777 = vpack.c.b16 %v759, %v757
    %v778 = vpack.c.b16 %v760, %v758
    %v779 = vpack.c.b16 %v763, %v761
    %v780 = vpack.c.b16 %v764, %v762
    %797 = vmatprep.subr.bf16.mxu0 %v780
    %798 = vmatpush1.bf16.msra.mxu0 %v779
    %799 = vmatprep.subr.bf16.mxu0 %v778
    %800 = vmatpush1.bf16.msra.mxu0 %v777
    %801 = vmatprep.subr.bf16.mxu0 %v776
    %802 = vmatpush1.bf16.msra.mxu0 %v775
    %803 = vmatprep.subr.bf16.mxu0 %v774
    %804 = vmatpush1.bf16.msra.mxu0 %v773
    %805 = vmatprep.subr.bf16.mxu0 %v772
    %806 = vmatpush1.bf16.msra.mxu0 %v771
    %807 = vmatprep.subr.bf16.mxu0 %v770
    %808 = vmatpush1.bf16.msra.mxu0 %v769
    %809 = vmatprep.subr.bf16.mxu0 %v768
    %810 = vmatpush1.bf16.msra.mxu0 %v767
    %811 = vmatprep.subr.bf16.mxu0 %v766
    %812 = vmatpush1.bf16.msra.mxu0 %v765
    %813 = vmatprep.subr.bf16.mxu0 0
    %814 = vmatpush2.bf16.msra.mxu0 0
    %815 = vmatprep.subr.bf16.mxu0 0
    %816 = vmatpush2.bf16.msra.mxu0 0
    %817 = vmatprep.subr.bf16.mxu0 0
    %818 = vmatpush2.bf16.msra.mxu0 0
    %819 = vmatprep.subr.bf16.mxu0 0
    %820 = vmatpush2.bf16.msra.mxu0 0
    %821 = vmatprep.subr.bf16.mxu0 0
    %822 = vmatpush2.bf16.msra.mxu0 0
    %823 = vmatprep.subr.bf16.mxu0 0
    %824 = vmatpush2.bf16.msra.mxu0 0
    %825 = vmatprep.subr.bf16.mxu0 0
    %826 = vmatpush2.bf16.msra.mxu0 0
    %827 = vmatprep.subr.bf16.mxu0 0
    %828 = vmatpush2.bf16.msra.mxu0 0
    %829 = vmatprep.mubr.bf16.mxu0 0
    %830 = vmatmul.mubr.bf16.gmra.mxu0 %v697
    %v831 = vpop.f32.mrf.mxu0
    %v832 = vadd.f32 0.0, %v831
    %v833 = vpop.f32.mrf.mxu0
    %v834 = vadd.f32 0.0, %v833
    %v835 = vpop.f32.mrf.mxu0
    %v836 = vadd.f32 0.0, %v835
    %v837 = vpop.f32.mrf.mxu0
    %v838 = vadd.f32 0.0, %v837
    %839 = vmatprep.mubr.bf16.mxu0 0
    %840 = vmatmul.mubr.bf16.gmra.mxu0 %v698
    %v841 = vpop.f32.mrf.mxu0
    %v842 = vadd.f32 0.0, %v841
    %v843 = vpop.f32.mrf.mxu0
    %v844 = vadd.f32 0.0, %v843
    %v845 = vpop.f32.mrf.mxu0
    %v846 = vadd.f32 0.0, %v845
    %v847 = vpop.f32.mrf.mxu0
    %v848 = vadd.f32 0.0, %v847
    %849 = vmatprep.mubr.bf16.mxu0 0
    %850 = vmatmul.mubr.bf16.gmra.mxu0 %v699
    %v851 = vpop.f32.mrf.mxu0
    %v852 = vadd.f32 0.0, %v851
    %v853 = vpop.f32.mrf.mxu0
    %v854 = vadd.f32 0.0, %v853
    %v855 = vpop.f32.mrf.mxu0
    %v856 = vadd.f32 0.0, %v855
    %v857 = vpop.f32.mrf.mxu0
    %v858 = vadd.f32 0.0, %v857
    %859 = vmatprep.mubr.bf16.mxu0 0
    %860 = vmatmul.mubr.bf16.gmra.mxu0 %v700
    %v861 = vpop.f32.mrf.mxu0
    %v862 = vadd.f32 0.0, %v861
    %v863 = vpop.f32.mrf.mxu0
    %v864 = vadd.f32 0.0, %v863
    %v865 = vpop.f32.mrf.mxu0
    %v866 = vadd.f32 0.0, %v865
    %v867 = vpop.f32.mrf.mxu0
    %v868 = vadd.f32 0.0, %v867
    %869 = vdwg.mxu0
    %v870 = vpack.c.bf16 %v836, %v832
    %v871 = vpack.c.bf16 %v846, %v842
    %v872 = vpack.c.bf16 %v856, %v852
    %v873 = vpack.c.bf16 %v866, %v862
    %874 = vmatprep.subr.bf16.mxu0 0
    %875 = vmatpush1.bf16.msra.mxu0 0
    %876 = vmatprep.subr.bf16.mxu0 0
    %877 = vmatpush1.bf16.msra.mxu0 0
    %878 = vmatprep.subr.bf16.mxu0 0
    %879 = vmatpush1.bf16.msra.mxu0 0
    %880 = vmatprep.subr.bf16.mxu0 0
    %881 = vmatpush1.bf16.msra.mxu0 0
    %882 = vmatprep.subr.bf16.mxu0 0
    %883 = vmatpush1.bf16.msra.mxu0 %v873
    %884 = vmatprep.subr.bf16.mxu0 0
    %885 = vmatpush1.bf16.msra.mxu0 %v872
    %886 = vmatprep.subr.bf16.mxu0 0
    %887 = vmatpush1.bf16.msra.mxu0 %v871
    %888 = vmatprep.subr.bf16.mxu0 0
    %889 = vmatpush1.bf16.msra.mxu0 %v870
    %890 = vmatprep.subr.bf16.mxu0 0
    %891 = vmatpush2.bf16.msra.mxu0 0
    %892 = vmatprep.subr.bf16.mxu0 0
    %893 = vmatpush2.bf16.msra.mxu0 0
    %894 = vmatprep.subr.bf16.mxu0 0
    %895 = vmatpush2.bf16.msra.mxu0 0
    %896 = vmatprep.subr.bf16.mxu0 0
    %897 = vmatpush2.bf16.msra.mxu0 0
    %898 = vmatprep.subr.bf16.mxu0 0
    %899 = vmatpush2.bf16.msra.mxu0 0
    %900 = vmatprep.subr.bf16.mxu0 0
    %901 = vmatpush2.bf16.msra.mxu0 0
    %902 = vmatprep.subr.bf16.mxu0 0
    %903 = vmatpush2.bf16.msra.mxu0 0
    %904 = vmatprep.subr.bf16.mxu0 0
    %905 = vmatpush2.bf16.msra.mxu0 0
    %906 = vmatprep.mubr.bf16.mxu0 0
    %907 = vmatmul.mubr.bf16.gmra.mxu0 %v333
    %v908 = vpop.f32.mrf.mxu0
    %v909 = vadd.f32 %v834, %v908
    %v910 = vpop.f32.mrf.mxu0
    %v911 = vpop.f32.mrf.mxu0
    %v912 = vadd.f32 %v838, %v911
    %v913 = vpop.f32.mrf.mxu0
    %914 = vmatprep.mubr.bf16.mxu0 0
    %915 = vmatmul.mubr.bf16.gmra.mxu0 %v336
    %v916 = vpop.f32.mrf.mxu0
    %v917 = vadd.f32 %v844, %v916
    %v918 = vpop.f32.mrf.mxu0
    %v919 = vpop.f32.mrf.mxu0
    %v920 = vadd.f32 %v848, %v919
    %v921 = vpop.f32.mrf.mxu0
    %922 = vmatprep.mubr.bf16.mxu0 0
    %923 = vmatmul.mubr.bf16.gmra.mxu0 %v339
    %v924 = vpop.f32.mrf.mxu0
    %v925 = vadd.f32 %v854, %v924
    %v926 = vpop.f32.mrf.mxu0
    %v927 = vpop.f32.mrf.mxu0
    %v928 = vadd.f32 %v858, %v927
    %v929 = vpop.f32.mrf.mxu0
    %930 = vmatprep.mubr.bf16.mxu0 0
    %931 = vmatmul.mubr.bf16.gmra.mxu0 %v342
    %v932 = vpop.f32.mrf.mxu0
    %v933 = vadd.f32 %v864, %v932
    %v934 = vpop.f32.mrf.mxu0
    %v935 = vpop.f32.mrf.mxu0
    %v936 = vadd.f32 %v868, %v935
    %v937 = vpop.f32.mrf.mxu0
    %938 = vdwg.mxu0
    %v939 = vld [vmem:[%s7] sm:$0x1]
    %v941 = vlaneseq
    %v942 = vshrl.u32 %v941, 7
    %v943 = vsub.s32 0, %v942
    %v944 = vrot.slane %v939, %v943
    %v946 = vadd.f32 %v909, %v944
    %v947 = vadd.f32 %v912, %v944
    %v948 = vadd.f32 %v917, %v944
    %v949 = vadd.f32 %v920, %v944
    %v950 = vadd.f32 %v925, %v944
    %v951 = vadd.f32 %v928, %v944
    %v952 = vadd.f32 %v933, %v944
    %v953 = vadd.f32 %v936, %v944
    %954 = vmax.xlane.f32.xlu0 %v946
    %v955 = vpop.xlane.xlu0 %954
    %956 = vmax.xlane.f32.xlu0 %v947
    %v957 = vpop.xlane.xlu0 %956
    %958 = vmax.xlane.f32.xlu0 %v948
    %v959 = vpop.xlane.xlu0 %958
    %960 = vmax.xlane.f32.xlu0 %v949
    %v961 = vpop.xlane.xlu0 %960
    %962 = vmax.xlane.f32.xlu0 %v950
    %v963 = vpop.xlane.xlu0 %962
    %964 = vmax.xlane.f32.xlu0 %v951
    %v965 = vpop.xlane.xlu0 %964
    %966 = vmax.xlane.f32.xlu0 %v952
    %v967 = vpop.xlane.xlu0 %966
    %968 = vmax.xlane.f32.xlu0 %v953
    %v969 = vpop.xlane.xlu0 %968
    %v970 = vsub.f32 %v946, %v955
    %v971 = vsub.f32 %v947, %v957
    %v972 = vsub.f32 %v948, %v959
    %v973 = vsub.f32 %v949, %v961
    %v974 = vsub.f32 %v950, %v963
    %v975 = vsub.f32 %v951, %v965
    %v976 = vsub.f32 %v952, %v967
    %v977 = vsub.f32 %v953, %v969
    %v978 = vmul.f32 %v970, 1.442695
    %v979 = vpow.pop %v978
    %v980 = vmul.f32 %v971, 1.442695
    %v981 = vpow.pop %v980
    %v982 = vmul.f32 %v972, 1.442695
    %v983 = vpow.pop %v982
    %v984 = vmul.f32 %v973, 1.442695
    %v985 = vpow.pop %v984
    %v986 = vmul.f32 %v974, 1.442695
    %v987 = vpow.pop %v986
    %v988 = vmul.f32 %v975, 1.442695
    %v989 = vpow.pop %v988
    %v990 = vmul.f32 %v976, 1.442695
    %v991 = vpow.pop %v990
    %v992 = vmul.f32 %v977, 1.442695
    %v993 = vpow.pop %v992
    %994 = vadd.xlane.f32.xlu0 %v979
    %v995 = vpop.xlane.xlu0 %994
    %996 = vadd.xlane.f32.xlu0 %v981
    %v997 = vpop.xlane.xlu0 %996
    %998 = vadd.xlane.f32.xlu0 %v983
    %v999 = vpop.xlane.xlu0 %998
    %1000 = vadd.xlane.f32.xlu0 %v985
    %v1001 = vpop.xlane.xlu0 %1000
    %1002 = vadd.xlane.f32.xlu0 %v987
    %v1003 = vpop.xlane.xlu0 %1002
    %1004 = vadd.xlane.f32.xlu0 %v989
    %v1005 = vpop.xlane.xlu0 %1004
    %1006 = vadd.xlane.f32.xlu0 %v991
    %v1007 = vpop.xlane.xlu0 %1006
    %1008 = vadd.xlane.f32.xlu0 %v993
    %v1009 = vpop.xlane.xlu0 %1008
    %v1010 = vlog2.pop %v995
    %v1011 = vmul.f32 %v1010, 0.6931472
    %v1012 = vlog2.pop %v997
    %v1013 = vmul.f32 %v1012, 0.6931472
    %v1014 = vlog2.pop %v999
    %v1015 = vmul.f32 %v1014, 0.6931472
    %v1016 = vlog2.pop %v1001
    %v1017 = vmul.f32 %v1016, 0.6931472
    %v1018 = vlog2.pop %v1003
    %v1019 = vmul.f32 %v1018, 0.6931472
    %v1020 = vlog2.pop %v1005
    %v1021 = vmul.f32 %v1020, 0.6931472
    %v1022 = vlog2.pop %v1007
    %v1023 = vmul.f32 %v1022, 0.6931472
    %v1024 = vlog2.pop %v1009
    %v1025 = vmul.f32 %v1024, 0.6931472
    %v1026 = vsub.f32 %v970, %v1011
    %v1027 = vsub.f32 %v971, %v1013
    %v1028 = vsub.f32 %v972, %v1015
    %v1029 = vsub.f32 %v973, %v1017
    %v1030 = vsub.f32 %v974, %v1019
    %v1031 = vsub.f32 %v975, %v1021
    %v1032 = vsub.f32 %v976, %v1023
    %v1033 = vsub.f32 %v977, %v1025
    %1034 = vst [vmem:[%s8] sm:$0xff] %v1026
    %1035 = vst [vmem:[%s8 + $0x8] sm:$0xff] %v1027
    %1036 = vst [vmem:[%s8 + $0x10] sm:$0xff] %v1028
    %1037 = vst [vmem:[%s8 + $0x18] sm:$0xff] %v1029
    %1038 = vst [vmem:[%s8 + $0x20] sm:$0xff] %v1030
    %1039 = vst [vmem:[%s8 + $0x28] sm:$0xff] %v1031
    %1040 = vst [vmem:[%s8 + $0x30] sm:$0xff] %v1032
    %1041 = vst [vmem:[%s8 + $0x38] sm:$0xff] %v1033
    // Predicated region
    $region54: #{sage_forward.1} parent=1 // pred_check
      _
    $region55: #{sage_forward.1} parent=1 // pred_check_branch
      %1043 = sbr.rel (0) target = $region57
    $region56: #{sage_forward.1} parent=1 // pred_region
      _
    $region57: #{sage_forward.1} parent=1 // pred_fallthru
      _
    // Predicated region
    $region58: #{sage_forward.1} parent=1 // pred_check
      _
    $region59: #{sage_forward.1} parent=1 // pred_check_branch
      %1045 = sbr.rel (0) target = $region61
    $region60: #{sage_forward.1} parent=1 // pred_region
      _
    $region61: #{sage_forward.1} parent=1 // pred_fallthru
      _
    %1046 = vsyncpa [#allocation3], 1
    %1047 = vsyncpa [#allocation5], 1
    %1048 = vsyncpa [#allocation8], 1

</llo_original>
